<compile_context>
chip_gen: v7x
topology: tpu7x:2x2x1
jax: 0.10.0
libtpu: 0.0.40
codegen_flags: <defaults>
</compile_context>

<pallas_src>
import functools

import jax
import jax.numpy as jnp
from jax.experimental import pallas as pl
from jax.experimental.pallas import tpu as pltpu


def _round_up(x, m):
    return ((x + m - 1) // m) * m


def _abmil_kernel(h_ref, w_enc_ref, b_enc_ref, w_gate_ref, b_gate_ref,
                  w_att_ref, b_att_ref, w_head_ref, b_head_ref,
                  attn_ref, logits_ref,
                  m_sc, l_sc, acc_sc,
                  *, n_valid, tile_n, d_pad, k_heads, k_rows):
    i = pl.program_id(0)

    @pl.when(i == 0)
    def _init():
        m_sc[...] = jnp.full_like(m_sc, -1e30)
        l_sc[...] = jnp.zeros_like(l_sc)
        acc_sc[...] = jnp.zeros_like(acc_sc)

    # ---- encoder: Linear(in_features, L) + ReLU (Dropout == identity in eval) ----
    h = jnp.dot(h_ref[...], w_enc_ref[...], preferred_element_type=jnp.float32)
    h = jnp.maximum(h + b_enc_ref[...], 0.0)                       # (T, Lp) f32
    h_b = h.astype(jnp.bfloat16)

    # ---- fused gated attention: one matmul for both V and U branches ----
    g = jnp.dot(h_b, w_gate_ref[...],
                preferred_element_type=jnp.float32) + b_gate_ref[...]   # (T, 2*Dp)
    a_v = jnp.tanh(g[:, :d_pad])                                   # f32, free view split
    a_u = jax.nn.sigmoid(g[:, d_pad:])
    gated = (a_v * a_u).astype(jnp.bfloat16)                       # (T, Dp)

    # ---- attention scores, computed lane-padded then transposed to (Kp, T) ----
    scores = jnp.dot(gated, w_att_ref[...],
                     preferred_element_type=jnp.float32) + b_att_ref[...]  # (T, Kp)
    scores_t = scores.T                                            # (Kp, T), aligned xpose
    st = scores_t[:k_rows, :]                                      # (k_rows, T)
    attn_ref[...] = st                                             # lane-dense raw scores

    # ---- online softmax over the instance axis (lanes), streamed across tiles ----
    col = jax.lax.broadcasted_iota(jnp.int32, (k_rows, tile_n), 1) + i * tile_n
    st_m = jnp.where(col < n_valid, st, -1e30)                     # mask padded rows
    m_tile = jnp.max(st_m, axis=1, keepdims=True)                  # (k_rows, 1)
    m_new = jnp.maximum(m_sc[...], m_tile)
    alpha = jnp.exp(m_sc[...] - m_new)
    p = jnp.exp(st_m - m_new)                                      # (k_rows, T)
    l_sc[...] = alpha * l_sc[...] + jnp.sum(p, axis=1, keepdims=True)
    # bag aggregation: contraction over the tile axis, no activation transpose
    acc_sc[...] = alpha * acc_sc[...] + jnp.dot(
        p.astype(jnp.bfloat16), h_b, preferred_element_type=jnp.float32)  # (k_rows, Lp)
    m_sc[...] = m_new

    # ---- finalize: normalize once per bag, then classification head ----
    @pl.when(i == pl.num_programs(0) - 1)
    def _finalize():
        inv_l = pl.reciprocal(l_sc[...], approx=True)              # EUP reciprocal
        m_bag = (acc_sc[...] * inv_l).astype(jnp.bfloat16)         # (k_rows, Lp)
        logits = jnp.dot(m_bag, w_head_ref[...],
                         preferred_element_type=jnp.float32) + b_head_ref[...]
        logits_ref[...] = logits[:k_heads, :]


def abmil_forward(H, params, *, tile_n=512):
    """ABMIL forward: streams instance tiles from HBM with an online softmax.

    Returns (logits (K, num_classes), attention_raw (N, K)), matching the
    PyTorch module's eval-mode forward.
    """
    N, F = H.shape
    L = params["w_enc"].shape[1]
    D = params["w_v"].shape[1]
    K = params["w_w"].shape[1]
    C = params["w_head"].shape[1]

    f32, bf16 = jnp.float32, jnp.bfloat16
    LP = _round_up(L, 128)                 # lane-pad encoder width
    DP = _round_up(D, 128)                 # lane-pad each gating branch
    KP = max(128, _round_up(K, 128))       # lane-pad score matmul output
    K_ROWS = max(8, _round_up(K, 8))       # sublane-aligned attention rows kept
    TILE_N = min(tile_n, _round_up(N, 128))  # biggest tile that is 128-aligned
    N_PAD = _round_up(N, TILE_N)
    num_tiles = N_PAD // TILE_N

    def pad2(x, r, c):
        return jnp.pad(x, ((0, r - x.shape[0]), (0, c - x.shape[1])))

    # bf16 on the HBM/MXU-input side, f32 biases (added post-matmul in f32).
    h_pad = jnp.pad(H, ((0, N_PAD - N), (0, 0))).astype(bf16)
    w_enc = pad2(params["w_enc"], F, LP).astype(bf16)
    b_enc = pad2(params["b_enc"], 1, LP).astype(f32)
    w_gate = pad2(jnp.concatenate([pad2(params["w_v"], L, DP),
                                   pad2(params["w_u"], L, DP)], axis=1),
                  LP, 2 * DP).astype(bf16)
    b_gate = jnp.concatenate([pad2(params["b_v"], 1, DP),
                              pad2(params["b_u"], 1, DP)], axis=1).astype(f32)
    w_att = pad2(params["w_w"], DP, KP).astype(bf16)
    b_att = pad2(params["b_w"], 1, KP).astype(f32)
    w_head = pad2(params["w_head"], LP, C).astype(bf16)
    b_head = params["b_head"].astype(f32)

    kernel = functools.partial(
        _abmil_kernel, n_valid=N, tile_n=TILE_N, d_pad=DP,
        k_heads=K, k_rows=K_ROWS)

    flops = int(2 * N_PAD * (F * LP + LP * 2 * DP + DP * KP + K_ROWS * LP)
                + 2 * K_ROWS * LP * C)
    transcendentals = int(N_PAD * 2 * DP + 2 * K_ROWS * N_PAD)
    bytes_accessed = int(
        h_pad.size * 2
        + (w_enc.size + w_gate.size + w_att.size + w_head.size) * 2
        + (b_enc.size + b_gate.size + b_att.size + b_head.size) * 4
        + K_ROWS * N_PAD * 4 + K * C * 4)

    grid_spec = pltpu.PrefetchScalarGridSpec(
        num_scalar_prefetch=0,
        grid=(num_tiles,),
        in_specs=[
            pl.BlockSpec((TILE_N, F), lambda i: (i, 0)),    # H tile (pipelined)
            pl.BlockSpec((F, LP), lambda i: (0, 0)),        # weights stay resident
            pl.BlockSpec((1, LP), lambda i: (0, 0)),
            pl.BlockSpec((LP, 2 * DP), lambda i: (0, 0)),
            pl.BlockSpec((1, 2 * DP), lambda i: (0, 0)),
            pl.BlockSpec((DP, KP), lambda i: (0, 0)),
            pl.BlockSpec((1, KP), lambda i: (0, 0)),
            pl.BlockSpec((LP, C), lambda i: (0, 0)),
            pl.BlockSpec((1, C), lambda i: (0, 0)),
        ],
        out_specs=[
            pl.BlockSpec((K_ROWS, TILE_N), lambda i: (0, i)),  # lane-dense attn
            pl.BlockSpec((K, C), lambda i: (0, 0)),            # logits (last step)
        ],
        scratch_shapes=[
            pltpu.VMEM((K_ROWS, 1), f32),    # running max
            pltpu.VMEM((K_ROWS, 1), f32),    # running denom
            pltpu.VMEM((K_ROWS, LP), f32),   # weighted-sum accumulator
        ],
    )

    attn_t, logits = pl.pallas_call(
        kernel,
        out_shape=(jax.ShapeDtypeStruct((K_ROWS, N_PAD), f32),
                   jax.ShapeDtypeStruct((K, C), f32)),
        grid_spec=grid_spec,
        compiler_params=pltpu.CompilerParams(
            dimension_semantics=("arbitrary",),          # carried accumulator
            vmem_limit_bytes=32 * 1024 * 1024),          # fits v5e/v6e/v7x budgets
        cost_estimate=pl.CostEstimate(flops=flops,
                                      transcendentals=transcendentals,
                                      bytes_accessed=bytes_accessed),
    )(h_pad, w_enc, b_enc, w_gate, b_gate, w_att, b_att, w_head, b_head)

    attn = attn_t[:K, :N].T        # back to the module's (N, K) raw-score layout
    return logits, attn


def _init_params(key, in_features, L, D, K, num_classes):
    """Deterministic synthetic parameters (uniform, PyTorch-Linear-like scale)."""
    ks = jax.random.split(key, 10)

    def lin(kw, kb, fan_in, fan_out):
        bound = 1.0 / jnp.sqrt(fan_in)
        w = jax.random.uniform(kw, (fan_in, fan_out), jnp.float32, -bound, bound)
        b = jax.random.uniform(kb, (1, fan_out), jnp.float32, -bound, bound)
        return w, b

    w_enc, b_enc = lin(ks[0], ks[1], in_features, L)
    w_v, b_v = lin(ks[2], ks[3], L, D)
    w_u, b_u = lin(ks[4], ks[5], L, D)
    w_w, b_w = lin(ks[6], ks[7], D, K)
    w_head, b_head = lin(ks[8], ks[9], L, num_classes)
    return dict(w_enc=w_enc, b_enc=b_enc, w_v=w_v, b_v=b_v, w_u=w_u, b_u=b_u,
                w_w=w_w, b_w=b_w, w_head=w_head, b_head=b_head)


def _reference_forward(H, p):
    """Pure-JAX reference mirroring the PyTorch module (eval mode) with the same
    bf16-input / f32-accumulate rounding points the kernel uses."""
    bf = lambda x: x.astype(jnp.bfloat16).astype(jnp.float32)
    h = jnp.maximum(bf(H) @ bf(p["w_enc"]) + p["b_enc"], 0.0)
    hb = bf(h)
    a_v = jnp.tanh(hb @ bf(p["w_v"]) + p["b_v"])
    a_u = jax.nn.sigmoid(hb @ bf(p["w_u"]) + p["b_u"])
    a_raw = bf(a_v * a_u) @ bf(p["w_w"]) + p["b_w"]        # (N, K)
    a_sm = jax.nn.softmax(a_raw.T, axis=1)                 # (K, N)
    m = bf(a_sm) @ hb                                      # (K, L)
    logits = bf(m) @ bf(p["w_head"]) + p["b_head"]         # (K, num_classes)
    return logits, a_raw


if __name__ == "__main__":
    # Small shapes consistent with the module's forward: H is (N, in_features).
    N, in_features, L, D, K, num_classes = 8, 32, 32, 16, 1, 4

    key = jax.random.PRNGKey(0)
    k_x, k_p = jax.random.split(key)
    H = jax.random.normal(k_x, (N, in_features), jnp.float32)
    params = _init_params(k_p, in_features, L, D, K, num_classes)

    logits, attn = abmil_forward(H, params)
    logits = jax.block_until_ready(logits)
    attn = jax.block_until_ready(attn)

    ref_logits, ref_attn = _reference_forward(H, params)
    assert logits.shape == (K, num_classes)
    assert attn.shape == (N, K)
    assert jnp.allclose(attn, ref_attn, atol=2e-3, rtol=2e-3)
    # logits tolerance covers bf16 rounding-point differences + approx reciprocal
    assert jnp.allclose(logits, ref_logits, atol=2e-2, rtol=2e-2)

    print("KERNEL_OK")
</pallas_src>

<mosaic_0001>
module attributes {stable_mosaic.version = 11 : i64} {
  func.func @_abmil_kernel(%arg0: i32, %arg1: memref<128x32xbf16, #tpu.memory_space<vmem>>, %arg2: memref<32x128xbf16, #tpu.memory_space<vmem>>, %arg3: memref<1x128xf32, #tpu.memory_space<vmem>>, %arg4: memref<128x256xbf16, #tpu.memory_space<vmem>>, %arg5: memref<1x256xf32, #tpu.memory_space<vmem>>, %arg6: memref<128x128xbf16, #tpu.memory_space<vmem>>, %arg7: memref<1x128xf32, #tpu.memory_space<vmem>>, %arg8: memref<128x4xbf16, #tpu.memory_space<vmem>>, %arg9: memref<1x4xf32, #tpu.memory_space<vmem>>, %arg10: memref<8x128xf32, #tpu.memory_space<vmem>>, %arg11: memref<1x4xf32, #tpu.memory_space<vmem>>, %arg12: memref<8x1xf32, #tpu.memory_space<vmem>>, %arg13: memref<8x1xf32, #tpu.memory_space<vmem>>, %arg14: memref<8x128xf32, #tpu.memory_space<vmem>>) attributes {dimension_semantics = [#tpu.dimension_semantics<arbitrary>], iteration_bounds = array<i64: 1>, scalar_prefetch = 0 : i64, scratch_operands = 3 : i64, tpu.core_type = #tpu.core_type<tc>, window_params = [{transform_indices = @transform_0, window_bounds = array<i64: 128, 32>}, {pipeline_mode = #tpu.pipeline_mode<synchronous>, transform_indices = @transform_1, window_bounds = array<i64: 32, 128>}, {pipeline_mode = #tpu.pipeline_mode<synchronous>, transform_indices = @transform_2, window_bounds = array<i64: 1, 128>}, {pipeline_mode = #tpu.pipeline_mode<synchronous>, transform_indices = @transform_3, window_bounds = array<i64: 128, 256>}, {pipeline_mode = #tpu.pipeline_mode<synchronous>, transform_indices = @transform_4, window_bounds = array<i64: 1, 256>}, {pipeline_mode = #tpu.pipeline_mode<synchronous>, transform_indices = @transform_5, window_bounds = array<i64: 128, 128>}, {pipeline_mode = #tpu.pipeline_mode<synchronous>, transform_indices = @transform_6, window_bounds = array<i64: 1, 128>}, {pipeline_mode = #tpu.pipeline_mode<synchronous>, transform_indices = @transform_7, window_bounds = array<i64: 128, 4>}, {pipeline_mode = #tpu.pipeline_mode<synchronous>, transform_indices = @transform_8, window_bounds = array<i64: 1, 4>}, {transform_indices = @transform_9, window_bounds = array<i64: 8, 128>}, {pipeline_mode = #tpu.pipeline_mode<synchronous>, transform_indices = @transform_10, window_bounds = array<i64: 1, 4>}]} {
    %c0_i32 = arith.constant 0 : i32
    %0 = arith.cmpi eq, %arg0, %c0_i32 : i32
    %1 = arith.extui %0 : i1 to i32
    %c0_i32_0 = arith.constant 0 : i32
    %2 = arith.cmpi ne, %1, %c0_i32_0 : i32
    scf.if %2 {
      %cst_40 = arith.constant -1.000000e+30 : f32
      %70 = vector.broadcast %cst_40 : f32 to vector<8x1xf32>
      %c0_41 = arith.constant 0 : index
      %c0_42 = arith.constant 0 : index
      %71 = vector.load %arg12[%c0_41, %c0_42] : memref<8x1xf32, #tpu.memory_space<vmem>>, vector<8x1xf32>
      tpu.vector_store %arg12[%c0_41, %c0_42], %70 {strides = array<i32>} : memref<8x1xf32, #tpu.memory_space<vmem>>, vector<8x1xf32>,
      %cst_43 = arith.constant 0.000000e+00 : f32
      %72 = vector.broadcast %cst_43 : f32 to vector<8x1xf32>
      %c0_44 = arith.constant 0 : index
      %c0_45 = arith.constant 0 : index
      %73 = vector.load %arg13[%c0_44, %c0_45] : memref<8x1xf32, #tpu.memory_space<vmem>>, vector<8x1xf32>
      tpu.vector_store %arg13[%c0_44, %c0_45], %72 {strides = array<i32>} : memref<8x1xf32, #tpu.memory_space<vmem>>, vector<8x1xf32>,
      %cst_46 = arith.constant 0.000000e+00 : f32
      %74 = vector.broadcast %cst_46 : f32 to vector<8x128xf32>
      %c0_47 = arith.constant 0 : index
      %c0_48 = arith.constant 0 : index
      %75 = vector.load %arg14[%c0_47, %c0_48] : memref<8x128xf32, #tpu.memory_space<vmem>>, vector<8x128xf32>
      tpu.vector_store %arg14[%c0_47, %c0_48], %74 {strides = array<i32>} : memref<8x128xf32, #tpu.memory_space<vmem>>, vector<8x128xf32>,
    } else {
    }
    %c0 = arith.constant 0 : index
    %c0_1 = arith.constant 0 : index
    %3 = vector.load %arg1[%c0, %c0_1] : memref<128x32xbf16, #tpu.memory_space<vmem>>, vector<128x32xbf16>
    %c0_2 = arith.constant 0 : index
    %c0_3 = arith.constant 0 : index
    %4 = vector.load %arg2[%c0_2, %c0_3] : memref<32x128xbf16, #tpu.memory_space<vmem>>, vector<32x128xbf16>
    %cst = arith.constant dense<0.000000e+00> : vector<128x128xf32>
    %5 = tpu.matmul %3, %4, %cst {dimension_numbers = #tpu.dot_dimension_numbers<[1], [0], [0], [1], [0, 0, 1, 1], [], []>} : vector<128x32xbf16>, vector<32x128xbf16>, vector<128x128xf32> -> vector<128x128xf32>
    %c0_4 = arith.constant 0 : index
    %c0_5 = arith.constant 0 : index
    %6 = vector.load %arg3[%c0_4, %c0_5] : memref<1x128xf32, #tpu.memory_space<vmem>>, vector<1x128xf32>
    %7 = vector.broadcast %6 : vector<1x128xf32> to vector<128x128xf32>
    %8 = arith.addf %5, %7 : vector<128x128xf32>
    %cst_6 = arith.constant 0.000000e+00 : f32
    %9 = vector.broadcast %cst_6 : f32 to vector<128x128xf32>
    %10 = arith.maximumf %8, %9 : vector<128x128xf32>
    %11 = arith.truncf %10 : vector<128x128xf32> to vector<128x128xbf16>
    %c0_7 = arith.constant 0 : index
    %c0_8 = arith.constant 0 : index
    %12 = vector.load %arg4[%c0_7, %c0_8] : memref<128x256xbf16, #tpu.memory_space<vmem>>, vector<128x256xbf16>
    %cst_9 = arith.constant dense<0.000000e+00> : vector<128x256xf32>
    %13 = tpu.matmul %11, %12, %cst_9 {dimension_numbers = #tpu.dot_dimension_numbers<[1], [0], [0], [1], [0, 0, 1, 1], [], []>} : vector<128x128xbf16>, vector<128x256xbf16>, vector<128x256xf32> -> vector<128x256xf32>
    %c0_10 = arith.constant 0 : index
    %c0_11 = arith.constant 0 : index
    %14 = vector.load %arg5[%c0_10, %c0_11] : memref<1x256xf32, #tpu.memory_space<vmem>>, vector<1x256xf32>
    %15 = vector.broadcast %14 : vector<1x256xf32> to vector<128x256xf32>
    %16 = arith.addf %13, %15 : vector<128x256xf32>
    %17 = vector.extract_strided_slice %16 {offsets = [0, 0], sizes = [128, 128], strides = [1, 1]} : vector<128x256xf32> to vector<128x128xf32>
    %18 = math.tanh %17 : vector<128x128xf32>
    %19 = vector.extract_strided_slice %16 {offsets = [0, 128], sizes = [128, 128], strides = [1, 1]} : vector<128x256xf32> to vector<128x128xf32>
    %20 = arith.negf %19 : vector<128x128xf32>
    %21 = math.exp %20 : vector<128x128xf32>
    %cst_12 = arith.constant 1.000000e+00 : f32
    %22 = vector.broadcast %cst_12 : f32 to vector<128x128xf32>
    %23 = arith.addf %22, %21 : vector<128x128xf32>
    %24 = arith.divf %22, %23 : vector<128x128xf32>
    %25 = arith.mulf %18, %24 : vector<128x128xf32>
    %26 = arith.truncf %25 : vector<128x128xf32> to vector<128x128xbf16>
    %c0_13 = arith.constant 0 : index
    %c0_14 = arith.constant 0 : index
    %27 = vector.load %arg6[%c0_13, %c0_14] : memref<128x128xbf16, #tpu.memory_space<vmem>>, vector<128x128xbf16>
    %cst_15 = arith.constant dense<0.000000e+00> : vector<128x128xf32>
    %28 = tpu.matmul %26, %27, %cst_15 {dimension_numbers = #tpu.dot_dimension_numbers<[1], [0], [0], [1], [0, 0, 1, 1], [], []>} : vector<128x128xbf16>, vector<128x128xbf16>, vector<128x128xf32> -> vector<128x128xf32>
    %c0_16 = arith.constant 0 : index
    %c0_17 = arith.constant 0 : index
    %29 = vector.load %arg7[%c0_16, %c0_17] : memref<1x128xf32, #tpu.memory_space<vmem>>, vector<1x128xf32>
    %30 = vector.broadcast %29 : vector<1x128xf32> to vector<128x128xf32>
    %31 = arith.addf %28, %30 : vector<128x128xf32>
    %32 = tpu.transpose %31, [1, 0] : vector<128x128xf32> -> vector<128x128xf32>
    %33 = vector.extract_strided_slice %32 {offsets = [0, 0], sizes = [8, 128], strides = [1, 1]} : vector<128x128xf32> to vector<8x128xf32>
    %c0_18 = arith.constant 0 : index
    %c0_19 = arith.constant 0 : index
    %34 = vector.load %arg10[%c0_18, %c0_19] : memref<8x128xf32, #tpu.memory_space<vmem>>, vector<8x128xf32>
    tpu.vector_store %arg10[%c0_18, %c0_19], %33 {strides = array<i32>} : memref<8x128xf32, #tpu.memory_space<vmem>>, vector<8x128xf32>,
    %35 = tpu.iota {dimensions = array<i32: 1>} : vector<8x128xi32>
    %c128_i32 = arith.constant 128 : i32
    %36 = arith.muli %arg0, %c128_i32 : i32
    %37 = vector.broadcast %36 : i32 to vector<8x128xi32>
    %38 = arith.addi %35, %37 : vector<8x128xi32>
    %c8_i32 = arith.constant 8 : i32
    %39 = vector.broadcast %c8_i32 : i32 to vector<8x128xi32>
    %40 = arith.cmpi slt, %38, %39 : vector<8x128xi32>
    %cst_20 = arith.constant -1.000000e+30 : f32
    %41 = vector.broadcast %cst_20 : f32 to vector<8x128xf32>
    %42 = arith.select %40, %33, %41 : vector<8x128xi1>, vector<8x128xf32>
    %cst_21 = arith.constant dense<0xFF800000> : vector<8xf32>
    %43 = vector.multi_reduction <maximumf>, %42, %cst_21 [1] : vector<8x128xf32> to vector<8xf32>
    %44 = vector.shape_cast %43 : vector<8xf32> to vector<8x1xf32>
    %c0_22 = arith.constant 0 : index
    %c0_23 = arith.constant 0 : index
    %45 = vector.load %arg12[%c0_22, %c0_23] : memref<8x1xf32, #tpu.memory_space<vmem>>, vector<8x1xf32>
    %46 = arith.maximumf %45, %44 : vector<8x1xf32>
    %c0_24 = arith.constant 0 : index
    %c0_25 = arith.constant 0 : index
    %47 = vector.load %arg12[%c0_24, %c0_25] : memref<8x1xf32, #tpu.memory_space<vmem>>, vector<8x1xf32>
    %48 = arith.subf %47, %46 : vector<8x1xf32>
    %49 = math.exp %48 : vector<8x1xf32>
    %50 = vector.broadcast %46 : vector<8x1xf32> to vector<8x128xf32>
    %51 = arith.subf %42, %50 : vector<8x128xf32>
    %52 = math.exp %51 : vector<8x128xf32>
    %c0_26 = arith.constant 0 : index
    %c0_27 = arith.constant 0 : index
    %53 = vector.load %arg13[%c0_26, %c0_27] : memref<8x1xf32, #tpu.memory_space<vmem>>, vector<8x1xf32>
    %54 = arith.mulf %49, %53 : vector<8x1xf32>
    %cst_28 = arith.constant dense<0.000000e+00> : vector<8xf32>
    %55 = vector.multi_reduction <add>, %52, %cst_28 [1] : vector<8x128xf32> to vector<8xf32>
    %56 = vector.shape_cast %55 : vector<8xf32> to vector<8x1xf32>
    %57 = arith.addf %54, %56 : vector<8x1xf32>
    %c0_29 = arith.constant 0 : index
    %c0_30 = arith.constant 0 : index
    %58 = vector.load %arg13[%c0_29, %c0_30] : memref<8x1xf32, #tpu.memory_space<vmem>>, vector<8x1xf32>
    tpu.vector_store %arg13[%c0_29, %c0_30], %57 {strides = array<i32>} : memref<8x1xf32, #tpu.memory_space<vmem>>, vector<8x1xf32>,
    %c0_31 = arith.constant 0 : index
    %c0_32 = arith.constant 0 : index
    %59 = vector.load %arg14[%c0_31, %c0_32] : memref<8x128xf32, #tpu.memory_space<vmem>>, vector<8x128xf32>
    %60 = vector.broadcast %49 : vector<8x1xf32> to vector<8x128xf32>
    %61 = arith.mulf %60, %59 : vector<8x128xf32>
    %62 = arith.truncf %52 : vector<8x128xf32> to vector<8x128xbf16>
    %cst_33 = arith.constant dense<0.000000e+00> : vector<8x128xf32>
    %63 = tpu.matmul %62, %11, %cst_33 {dimension_numbers = #tpu.dot_dimension_numbers<[1], [0], [0], [1], [0, 0, 1, 1], [], []>} : vector<8x128xbf16>, vector<128x128xbf16>, vector<8x128xf32> -> vector<8x128xf32>
    %64 = arith.addf %61, %63 : vector<8x128xf32>
    %c0_34 = arith.constant 0 : index
    %c0_35 = arith.constant 0 : index
    %65 = vector.load %arg14[%c0_34, %c0_35] : memref<8x128xf32, #tpu.memory_space<vmem>>, vector<8x128xf32>
    tpu.vector_store %arg14[%c0_34, %c0_35], %64 {strides = array<i32>} : memref<8x128xf32, #tpu.memory_space<vmem>>, vector<8x128xf32>,
    %c0_36 = arith.constant 0 : index
    %c0_37 = arith.constant 0 : index
    %66 = vector.load %arg12[%c0_36, %c0_37] : memref<8x1xf32, #tpu.memory_space<vmem>>, vector<8x1xf32>
    tpu.vector_store %arg12[%c0_36, %c0_37], %46 {strides = array<i32>} : memref<8x1xf32, #tpu.memory_space<vmem>>, vector<8x1xf32>,
    %c0_i32_38 = arith.constant 0 : i32
    %67 = arith.cmpi eq, %arg0, %c0_i32_38 : i32
    %68 = arith.extui %67 : i1 to i32
    %c0_i32_39 = arith.constant 0 : i32
    %69 = arith.cmpi ne, %68, %c0_i32_39 : i32
    scf.if %69 {
      %c0_40 = arith.constant 0 : index
      %c0_41 = arith.constant 0 : index
      %70 = vector.load %arg13[%c0_40, %c0_41] : memref<8x1xf32, #tpu.memory_space<vmem>>, vector<8x1xf32>
      %71 = tpu.reciprocal %70 {approx = true} : vector<8x1xf32> -> vector<8x1xf32>
      %c0_42 = arith.constant 0 : index
      %c0_43 = arith.constant 0 : index
      %72 = vector.load %arg14[%c0_42, %c0_43] : memref<8x128xf32, #tpu.memory_space<vmem>>, vector<8x128xf32>
      %73 = vector.broadcast %71 : vector<8x1xf32> to vector<8x128xf32>
      %74 = arith.mulf %72, %73 : vector<8x128xf32>
      %75 = arith.truncf %74 : vector<8x128xf32> to vector<8x128xbf16>
      %c0_44 = arith.constant 0 : index
      %c0_45 = arith.constant 0 : index
      %76 = vector.load %arg8[%c0_44, %c0_45] : memref<128x4xbf16, #tpu.memory_space<vmem>>, vector<128x4xbf16>
      %cst_46 = arith.constant dense<0.000000e+00> : vector<8x4xf32>
      %77 = tpu.matmul %75, %76, %cst_46 {dimension_numbers = #tpu.dot_dimension_numbers<[1], [0], [0], [1], [0, 0, 1, 1], [], []>} : vector<8x128xbf16>, vector<128x4xbf16>, vector<8x4xf32> -> vector<8x4xf32>
      %c0_47 = arith.constant 0 : index
      %c0_48 = arith.constant 0 : index
      %78 = vector.load %arg9[%c0_47, %c0_48] : memref<1x4xf32, #tpu.memory_space<vmem>>, vector<1x4xf32>
      %79 = vector.broadcast %78 : vector<1x4xf32> to vector<8x4xf32>
      %80 = arith.addf %77, %79 : vector<8x4xf32>
      %81 = vector.extract_strided_slice %80 {offsets = [0, 0], sizes = [1, 4], strides = [1, 1]} : vector<8x4xf32> to vector<1x4xf32>
      %c0_49 = arith.constant 0 : index
      %c0_50 = arith.constant 0 : index
      %82 = vector.load %arg11[%c0_49, %c0_50] : memref<1x4xf32, #tpu.memory_space<vmem>>, vector<1x4xf32>
      tpu.vector_store %arg11[%c0_49, %c0_50], %81 {strides = array<i32>} : memref<1x4xf32, #tpu.memory_space<vmem>>, vector<1x4xf32>,
    } else {
    }
    return
  }
  func.func @transform_0(%arg0: i32) -> (i32, i32) {
    %c0_i32 = arith.constant 0 : i32
    %c0_i32_0 = arith.constant 0 : i32
    return %arg0, %c0_i32 : i32, i32
  }
  func.func @transform_1(%arg0: i32) -> (i32, i32) {
    %c0_i32 = arith.constant 0 : i32
    %c0_i32_0 = arith.constant 0 : i32
    %c0_i32_1 = arith.constant 0 : i32
    return %c0_i32, %c0_i32_0 : i32, i32
  }
  func.func @transform_2(%arg0: i32) -> (i32, i32) {
    %c0_i32 = arith.constant 0 : i32
    %c0_i32_0 = arith.constant 0 : i32
    %c0_i32_1 = arith.constant 0 : i32
    return %c0_i32, %c0_i32_0 : i32, i32
  }
  func.func @transform_3(%arg0: i32) -> (i32, i32) {
    %c0_i32 = arith.constant 0 : i32
    %c0_i32_0 = arith.constant 0 : i32
    %c0_i32_1 = arith.constant 0 : i32
    return %c0_i32, %c0_i32_0 : i32, i32
  }
  func.func @transform_4(%arg0: i32) -> (i32, i32) {
    %c0_i32 = arith.constant 0 : i32
    %c0_i32_0 = arith.constant 0 : i32
    %c0_i32_1 = arith.constant 0 : i32
    return %c0_i32, %c0_i32_0 : i32, i32
  }
  func.func @transform_5(%arg0: i32) -> (i32, i32) {
    %c0_i32 = arith.constant 0 : i32
    %c0_i32_0 = arith.constant 0 : i32
    %c0_i32_1 = arith.constant 0 : i32
    return %c0_i32, %c0_i32_0 : i32, i32
  }
  func.func @transform_6(%arg0: i32) -> (i32, i32) {
    %c0_i32 = arith.constant 0 : i32
    %c0_i32_0 = arith.constant 0 : i32
    %c0_i32_1 = arith.constant 0 : i32
    return %c0_i32, %c0_i32_0 : i32, i32
  }
  func.func @transform_7(%arg0: i32) -> (i32, i32) {
    %c0_i32 = arith.constant 0 : i32
    %c0_i32_0 = arith.constant 0 : i32
    %c0_i32_1 = arith.constant 0 : i32
    return %c0_i32, %c0_i32_0 : i32, i32
  }
  func.func @transform_8(%arg0: i32) -> (i32, i32) {
    %c0_i32 = arith.constant 0 : i32
    %c0_i32_0 = arith.constant 0 : i32
    %c0_i32_1 = arith.constant 0 : i32
    return %c0_i32, %c0_i32_0 : i32, i32
  }
  func.func @transform_9(%arg0: i32) -> (i32, i32) {
    %c0_i32 = arith.constant 0 : i32
    %c0_i32_0 = arith.constant 0 : i32
    return %c0_i32, %arg0 : i32, i32
  }
  func.func @transform_10(%arg0: i32) -> (i32, i32) {
    %c0_i32 = arith.constant 0 : i32
    %c0_i32_0 = arith.constant 0 : i32
    %c0_i32_1 = arith.constant 0 : i32
    return %c0_i32, %c0_i32_0 : i32, i32
  }
}

</mosaic_0001>

<llo_original>
// kernel: tpu_custom_call.1
$region0: #{tpu_custom_call.1}
  #allocation0 [shape = 'u32[]', space=smem, size = 0x4, offset = 0x4, fixed_abs, tag = 'smem constant byte address 0x4 - core index']
  #allocation1 [shape = 'u32[144,128]{1,0:T(1,128)}', space=vmem, size = 0x12000, scoped, tag = 'internal scratch']
  #allocation2 [shape = 'f32[8,1]{1,0:T(8,128)}', space=vmem, size = 0x1000, scoped, tag = 'scratch operand']
  #allocation3 [shape = 'f32[8,1]{1,0:T(8,128)}', space=vmem, size = 0x1000, scoped, tag = 'scratch operand']
  #allocation4 [shape = 'f32[8,128]{1,0:T(8,128)}', space=vmem, size = 0x1000, scoped, tag = 'scratch operand']
  %s0 = inlined_call_operand.vmem [shape: bf16[128,32], index: 0, kind: input, shape index: {}]
  %s1 = inlined_call_operand.vmem [shape: bf16[32,128], index: 1, kind: input, shape index: {}]
  %s2 = inlined_call_operand.vmem [shape: f32[1,128], index: 2, kind: input, shape index: {}]
  %s3 = inlined_call_operand.vmem [shape: bf16[128,256], index: 3, kind: input, shape index: {}]
  %s4 = inlined_call_operand.vmem [shape: f32[1,256], index: 4, kind: input, shape index: {}]
  %s5 = inlined_call_operand.hbm [shape: bf16[128,128], index: 5, kind: input, shape index: {}]
  %s6 = inlined_call_operand.vmem [shape: f32[1,128], index: 6, kind: input, shape index: {}]
  %s7 = inlined_call_operand.vmem [shape: bf16[128,4], index: 7, kind: input, shape index: {}]
  %s8 = inlined_call_operand.vmem [shape: f32[1,4], index: 8, kind: input, shape index: {}]
  %s9 = inlined_call_operand.hbm [shape: f32[8,128], index: 9, kind: output, shape index: {0}]
  %s10 = inlined_call_operand.hbm [shape: f32[1,4], index: 10, kind: output, shape index: {1}]
  %11 = xla_tuple %s9, %s10
  %s12 = sld [smem:[#allocation0]]
  $region66: #{tpu_custom_call.1} parent=0
    _
  %s14 = ssub.s32 1, %s12
  %s15 = scalar_select 0, %s14, %s12
  $region1: #{tpu_custom_call.1} parent=0
    #allocation5 [shape = 'u8[32768]{0}', space=vmem, size = 0x8000, scoped, tag = 'input window, operand 5, single buffered']
    #allocation6 [shape = 's32[1]{0}', space=sflag, size = 0x4, scoped, tag = 'scoped memory for tpu_custom_call.1']
    #allocation7 [shape = 's32[1]{0}', space=sflag, size = 0x4, scoped, tag = 'scoped memory for tpu_custom_call.1']
    #allocation8 [shape = 'u8[4096]{0}', space=vmem, size = 0x1000, scoped, tag = 'output window, operand 0, single buffered']
    #allocation9 [shape = 'u8[512]{0}', space=vmem, size = 0x400, scoped, tag = 'output window, operand 1, single buffered']
    #allocation10 [shape = 's32[1]{0}', space=sflag, size = 0x4, scoped, tag = 'scoped memory for tpu_custom_call.1']
    %16 = vsyncpa [#allocation6], 0
    %17 = vsyncpa [#allocation7], 0
    %18 = vsyncpa [#allocation10], 0
    // Predicated region
    $region2: #{tpu_custom_call.1} parent=1 // pred_check
      _
    $region3: #{tpu_custom_call.1} parent=1 // pred_check_branch
      %20 = sbr.rel (0) target = $region5
    $region4: #{tpu_custom_call.1} parent=1 // pred_region
      _
    $region5: #{tpu_custom_call.1} parent=1 // pred_fallthru
      _
    // Predicated region
    $region6: #{tpu_custom_call.1} parent=1 // pred_check
      _
    $region7: #{tpu_custom_call.1} parent=1 // pred_check_branch
      %22 = sbr.rel (0) target = $region9
    $region8: #{tpu_custom_call.1} parent=1 // pred_region
      _
    $region9: #{tpu_custom_call.1} parent=1 // pred_fallthru
      _
    // Predicated region
    $region10: #{tpu_custom_call.1} parent=1 // pred_check
      _
    $region11: #{tpu_custom_call.1} parent=1 // pred_check_branch
      %24 = sbr.rel (0) target = $region13
    $region12: #{tpu_custom_call.1} parent=1 // pred_region
      _
    $region13: #{tpu_custom_call.1} parent=1 // pred_fallthru
      _
    // Predicated region
    $region14: #{tpu_custom_call.1} parent=1 // pred_check
      _
    $region15: #{tpu_custom_call.1} parent=1 // pred_check_branch
      %26 = sbr.rel (0) target = $region17
    $region16: #{tpu_custom_call.1} parent=1 // pred_region
      _
    $region17: #{tpu_custom_call.1} parent=1 // pred_fallthru
      _
    // Predicated region
    $region18: #{tpu_custom_call.1} parent=1 // pred_check
      _
    $region19: #{tpu_custom_call.1} parent=1 // pred_check_branch
      %28 = sbr.rel (0) target = $region21
    $region20: #{tpu_custom_call.1} parent=1 // pred_region
      _
    $region21: #{tpu_custom_call.1} parent=1 // pred_fallthru
      _
    // Predicated region
    $region22: #{tpu_custom_call.1} parent=1 // pred_check
      _
    $region23: #{tpu_custom_call.1} parent=1 // pred_check_branch
      %30 = sbr.rel (0) target = $region25
    $region24: #{tpu_custom_call.1} parent=1 // pred_region
      %s32 = ssub.s32 1024, 1024
      %33 = vsyncadd [#allocation6], %s32
      %s34 = sshll.u32 [#allocation5], 4
      %s35 = int_to_ptr.vmem [resolvable:$true] %s34
      %40 = dma.hbm_to_vmem [thread:$0]  %s5, 1024, %s35, [#allocation6], 64, 64, 4
    $region25: #{tpu_custom_call.1} parent=1 // pred_fallthru
      _
    // Predicated region
    $region26: #{tpu_custom_call.1} parent=1 // pred_check
      _
    $region27: #{tpu_custom_call.1} parent=1 // pred_check_branch
      %42 = sbr.rel (0) target = $region29
    $region28: #{tpu_custom_call.1} parent=1 // pred_region
      _
    $region29: #{tpu_custom_call.1} parent=1 // pred_fallthru
      _
    // Predicated region
    $region30: #{tpu_custom_call.1} parent=1 // pred_check
      _
    $region31: #{tpu_custom_call.1} parent=1 // pred_check_branch
      %44 = sbr.rel (0) target = $region33
    $region32: #{tpu_custom_call.1} parent=1 // pred_region
      _
    $region33: #{tpu_custom_call.1} parent=1 // pred_fallthru
      _
    // Predicated region
    $region34: #{tpu_custom_call.1} parent=1 // pred_check
      _
    $region35: #{tpu_custom_call.1} parent=1 // pred_check_branch
      %46 = sbr.rel (0) target = $region37
    $region36: #{tpu_custom_call.1} parent=1 // pred_region
      _
    $region37: #{tpu_custom_call.1} parent=1 // pred_fallthru
      _
    // Predicated region
    $region38: #{tpu_custom_call.1} parent=1 // pred_check
      _
    $region39: #{tpu_custom_call.1} parent=1 // pred_check_branch
      %48 = sbr.rel (0) target = $region41
    $region40: #{tpu_custom_call.1} parent=1 // pred_region
      %49 = dma.done [#allocation6], 1024
    $region41: #{tpu_custom_call.1} parent=1 // pred_fallthru
      _
    %p51 = scmp.eq.s32.totalorder 0, 0
    // Predicated region
    $region42: #{tpu_custom_call.1} parent=1 // pred_check
      %p52 = pneg %p51
    $region43: #{tpu_custom_call.1} parent=1 // pred_check_branch
      %54 = sbr.rel (%p52) target = $region45
    $region44: #{tpu_custom_call.1} parent=1 // pred_region
      %vm55 = vcmask 7168
      %56 = vst.msk [vmem:[#allocation2] sm:$0xff] %vm55, -1e+30
      %57 = vst.msk [vmem:[#allocation3] sm:$0xff] %vm55, 0.0
      %58 = vst [vmem:[#allocation4] sm:$0xff] 0.0
    $region45: #{tpu_custom_call.1} parent=1 // pred_fallthru
      _
    %v59 = vld [vmem:[%s0] sm:$0xf]
    %v60 = vld [vmem:[%s0 + $0x4] sm:$0xf]
    %v61 = vld [vmem:[%s0 + $0x8] sm:$0xf]
    %v62 = vld [vmem:[%s0 + $0xc] sm:$0xf]
    %v63 = vld [vmem:[%s0 + $0x10] sm:$0xf]
    %v64 = vld [vmem:[%s0 + $0x14] sm:$0xf]
    %v65 = vld [vmem:[%s0 + $0x18] sm:$0xf]
    %v66 = vld [vmem:[%s0 + $0x1c] sm:$0xf]
    %v67 = vld [vmem:[%s0 + $0x20] sm:$0xf]
    %v68 = vld [vmem:[%s0 + $0x24] sm:$0xf]
    %v69 = vld [vmem:[%s0 + $0x28] sm:$0xf]
    %v70 = vld [vmem:[%s0 + $0x2c] sm:$0xf]
    %v71 = vld [vmem:[%s0 + $0x30] sm:$0xf]
    %v72 = vld [vmem:[%s0 + $0x34] sm:$0xf]
    %v73 = vld [vmem:[%s0 + $0x38] sm:$0xf]
    %v74 = vld [vmem:[%s0 + $0x3c] sm:$0xf]
    %v75 = vld [vmem:[%s1] sm:$0xf]
    %v76 = vld [vmem:[%s1 + $0x4] sm:$0xf]
    %v77 = vld [vmem:[%s1 + $0x8] sm:$0xf]
    %v78 = vld [vmem:[%s1 + $0xc] sm:$0xf]
    %v79 = vld [vmem:[%s2] sm:$0x1]
    %v81 = vlaneseq
    %v82 = vshrl.u32 %v81, 7
    %v83 = vsub.s32 0, %v82
    %v84 = vrot.slane %v79, %v83
    %v102 = vunpack.c.l.b16 %v59
    %v103 = vunpack.c.l.b16 %v60
    %v104 = vunpack.c.l.b16 %v61
    %v105 = vunpack.c.l.b16 %v62
    %v106 = vunpack.c.l.b16 %v63
    %v107 = vunpack.c.l.b16 %v64
    %v108 = vunpack.c.l.b16 %v65
    %v109 = vunpack.c.l.b16 %v66
    %v110 = vunpack.c.l.b16 %v67
    %v111 = vunpack.c.l.b16 %v68
    %v112 = vunpack.c.l.b16 %v69
    %v113 = vunpack.c.l.b16 %v70
    %v114 = vunpack.c.l.b16 %v71
    %v115 = vunpack.c.l.b16 %v72
    %v116 = vunpack.c.l.b16 %v73
    %v117 = vunpack.c.l.b16 %v74
    %v118 = vpack.c.b16 %v103, %v102
    %v119 = vpack.c.b16 %v105, %v104
    %v120 = vpack.c.b16 %v107, %v106
    %v121 = vpack.c.b16 %v109, %v108
    %v122 = vpack.c.b16 %v111, %v110
    %v123 = vpack.c.b16 %v113, %v112
    %v124 = vpack.c.b16 %v115, %v114
    %v125 = vpack.c.b16 %v117, %v116
    %v130 = vunpack.c.l.b16 %v75
    %v131 = vunpack.c.l.b16 %v76
    %v132 = vunpack.c.l.b16 %v77
    %v133 = vunpack.c.l.b16 %v78
    %v134 = vpack.c.b16 %v131, %v130
    %v135 = vpack.c.b16 %v133, %v132
    %vm138 = vcmask 261120
    %v140 = vsel %vm138, %v118, 0
    %v143 = vsel %vm138, %v119, 0
    %v146 = vsel %vm138, %v120, 0
    %v149 = vsel %vm138, %v121, 0
    %v152 = vsel %vm138, %v122, 0
    %v155 = vsel %vm138, %v123, 0
    %v158 = vsel %vm138, %v124, 0
    %v161 = vsel %vm138, %v125, 0
    %163 = vmatprep.subr.bf16.mxu0 0
    %164 = vmatpush1.bf16.msra.mxu0 %v134
    %165 = vmatprep.subr.bf16.mxu0 0
    %166 = vmatpush1.bf16.msra.mxu0 %v135
    %167 = vmatprep.subr.bf16.mxu0 0
    %168 = vmatpush1.bf16.msra.mxu0 0
    %169 = vmatprep.subr.bf16.mxu0 0
    %170 = vmatpush1.bf16.msra.mxu0 0
    %171 = vmatprep.subr.bf16.mxu0 0
    %172 = vmatpush1.bf16.msra.mxu0 0
    %173 = vmatprep.subr.bf16.mxu0 0
    %174 = vmatpush1.bf16.msra.mxu0 0
    %175 = vmatprep.subr.bf16.mxu0 0
    %176 = vmatpush1.bf16.msra.mxu0 0
    %177 = vmatprep.subr.bf16.mxu0 0
    %178 = vmatpush1.bf16.msra.mxu0 0
    %179 = vmatprep.subr.bf16.mxu0 0
    %180 = vmatpush1.bf16.msra.mxu0 0
    %181 = vmatprep.subr.bf16.mxu0 0
    %182 = vmatpush1.bf16.msra.mxu0 0
    %183 = vmatprep.subr.bf16.mxu0 0
    %184 = vmatpush1.bf16.msra.mxu0 0
    %185 = vmatprep.subr.bf16.mxu0 0
    %186 = vmatpush1.bf16.msra.mxu0 0
    %187 = vmatprep.subr.bf16.mxu0 0
    %188 = vmatpush1.bf16.msra.mxu0 0
    %189 = vmatprep.subr.bf16.mxu0 0
    %190 = vmatpush1.bf16.msra.mxu0 0
    %191 = vmatprep.subr.bf16.mxu0 0
    %192 = vmatpush1.bf16.msra.mxu0 0
    %193 = vmatprep.subr.bf16.mxu0 0
    %194 = vmatpush1.bf16.msra.mxu0 0
    %195 = vmatprep.mubr.bf16.mxu0 0
    %196 = vmatmul.mubr.bf16.gmra.mrb[0].mxu0 %v140
    %v197 = vpop.f32.mrb[0].mxu0
    %v198 = vadd.f32 %v84, %v197
    %v199 = vpop.f32.mrb[0].mxu0
    %v200 = vpop.f32.mrb[0].mxu0
    %v201 = vadd.f32 %v84, %v200
    %v202 = vpop.f32.mrb[0].mxu0
    %203 = vmatprep.mubr.bf16.mxu0 0
    %204 = vmatmul.mubr.bf16.gmra.mrb[0].mxu0 %v143
    %v205 = vpop.f32.mrb[0].mxu0
    %v206 = vadd.f32 %v84, %v205
    %v207 = vpop.f32.mrb[0].mxu0
    %v208 = vpop.f32.mrb[0].mxu0
    %v209 = vadd.f32 %v84, %v208
    %v210 = vpop.f32.mrb[0].mxu0
    %211 = vmatprep.mubr.bf16.mxu0 0
    %212 = vmatmul.mubr.bf16.gmra.mrb[0].mxu0 %v146
    %v213 = vpop.f32.mrb[0].mxu0
    %v214 = vadd.f32 %v84, %v213
    %v215 = vpop.f32.mrb[0].mxu0
    %v216 = vpop.f32.mrb[0].mxu0
    %v217 = vadd.f32 %v84, %v216
    %v218 = vpop.f32.mrb[0].mxu0
    %219 = vmatprep.mubr.bf16.mxu0 0
    %220 = vmatmul.mubr.bf16.gmra.mrb[0].mxu0 %v149
    %v221 = vpop.f32.mrb[0].mxu0
    %v222 = vadd.f32 %v84, %v221
    %v223 = vpop.f32.mrb[0].mxu0
    %v224 = vpop.f32.mrb[0].mxu0
    %v225 = vadd.f32 %v84, %v224
    %v226 = vpop.f32.mrb[0].mxu0
    %227 = vmatprep.mubr.bf16.mxu0 0
    %228 = vmatmul.mubr.bf16.gmra.mrb[0].mxu0 %v152
    %v229 = vpop.f32.mrb[0].mxu0
    %v230 = vadd.f32 %v84, %v229
    %v231 = vpop.f32.mrb[0].mxu0
    %v232 = vpop.f32.mrb[0].mxu0
    %v233 = vadd.f32 %v84, %v232
    %v234 = vpop.f32.mrb[0].mxu0
    %235 = vmatprep.mubr.bf16.mxu0 0
    %236 = vmatmul.mubr.bf16.gmra.mrb[0].mxu0 %v155
    %v237 = vpop.f32.mrb[0].mxu0
    %v238 = vadd.f32 %v84, %v237
    %v239 = vpop.f32.mrb[0].mxu0
    %v240 = vpop.f32.mrb[0].mxu0
    %v241 = vadd.f32 %v84, %v240
    %v242 = vpop.f32.mrb[0].mxu0
    %243 = vmatprep.mubr.bf16.mxu0 0
    %244 = vmatmul.mubr.bf16.gmra.mrb[0].mxu0 %v158
    %v245 = vpop.f32.mrb[0].mxu0
    %v246 = vadd.f32 %v84, %v245
    %v247 = vpop.f32.mrb[0].mxu0
    %v248 = vpop.f32.mrb[0].mxu0
    %v249 = vadd.f32 %v84, %v248
    %v250 = vpop.f32.mrb[0].mxu0
    %251 = vmatprep.mubr.bf16.mxu0 0
    %252 = vmatmul.mubr.bf16.gmra.mrb[0].mxu0 %v161
    %v253 = vpop.f32.mrb[0].mxu0
    %v254 = vadd.f32 %v84, %v253
    %v255 = vpop.f32.mrb[0].mxu0
    %v256 = vpop.f32.mrb[0].mxu0
    %v257 = vadd.f32 %v84, %v256
    %v258 = vpop.f32.mrb[0].mxu0
    %259 = vdwg.mxu0
    %v260 = vmax.f32 %v198, 0.0
    %v261 = vmax.f32 %v201, 0.0
    %v262 = vmax.f32 %v206, 0.0
    %v263 = vmax.f32 %v209, 0.0
    %v264 = vmax.f32 %v214, 0.0
    %v265 = vmax.f32 %v217, 0.0
    %v266 = vmax.f32 %v222, 0.0
    %v267 = vmax.f32 %v225, 0.0
    %v268 = vmax.f32 %v230, 0.0
    %v269 = vmax.f32 %v233, 0.0
    %v270 = vmax.f32 %v238, 0.0
    %v271 = vmax.f32 %v241, 0.0
    %v272 = vmax.f32 %v246, 0.0
    %v273 = vmax.f32 %v249, 0.0
    %v274 = vmax.f32 %v254, 0.0
    %v275 = vmax.f32 %v257, 0.0
    %v276 = vpack.c.bf16 %v261, %v260
    %v277 = vpack.c.bf16 %v263, %v262
    %v278 = vpack.c.bf16 %v265, %v264
    %v279 = vpack.c.bf16 %v267, %v266
    %v280 = vpack.c.bf16 %v269, %v268
    %v281 = vpack.c.bf16 %v271, %v270
    %v282 = vpack.c.bf16 %v273, %v272
    %v283 = vpack.c.bf16 %v275, %v274
    %v284 = vld [vmem:[%s3] sm:$0xff]
    %v285 = vld [vmem:[%s3 + $0x8] sm:$0xff]
    %v286 = vld [vmem:[%s3 + $0x10] sm:$0xff]
    %v287 = vld [vmem:[%s3 + $0x18] sm:$0xff]
    %v288 = vld [vmem:[%s3 + $0x20] sm:$0xff]
    %v289 = vld [vmem:[%s3 + $0x28] sm:$0xff]
    %v290 = vld [vmem:[%s3 + $0x30] sm:$0xff]
    %v291 = vld [vmem:[%s3 + $0x38] sm:$0xff]
    %v292 = vld [vmem:[%s3 + $0x40] sm:$0xff]
    %v293 = vld [vmem:[%s3 + $0x48] sm:$0xff]
    %v294 = vld [vmem:[%s3 + $0x50] sm:$0xff]
    %v295 = vld [vmem:[%s3 + $0x58] sm:$0xff]
    %v296 = vld [vmem:[%s3 + $0x60] sm:$0xff]
    %v297 = vld [vmem:[%s3 + $0x68] sm:$0xff]
    %v298 = vld [vmem:[%s3 + $0x70] sm:$0xff]
    %v299 = vld [vmem:[%s3 + $0x78] sm:$0xff]
    %v300 = vld [vmem:[%s4] sm:$0x3]
    %v302 = vlaneseq
    %v303 = vshrl.u32 %v302, 7
    %v304 = vsub.s32 0, %v303
    %v305 = vrot.slane %v300, %v304
    %v306 = vlaneseq
    %v307 = vshrl.u32 %v306, 7
    %v308 = vsub.s32 1, %v307
    %v309 = vrot.slane %v300, %v308
    %v328 = vunpack.c.l.b16 %v284
    %v329 = vunpack.c.h.b16 %v284
    %v330 = vunpack.c.l.b16 %v285
    %v331 = vunpack.c.h.b16 %v285
    %v332 = vunpack.c.l.b16 %v286
    %v333 = vunpack.c.h.b16 %v286
    %v334 = vunpack.c.l.b16 %v287
    %v335 = vunpack.c.h.b16 %v287
    %v336 = vunpack.c.l.b16 %v288
    %v337 = vunpack.c.h.b16 %v288
    %v338 = vunpack.c.l.b16 %v289
    %v339 = vunpack.c.h.b16 %v289
    %v340 = vunpack.c.l.b16 %v290
    %v341 = vunpack.c.h.b16 %v290
    %v342 = vunpack.c.l.b16 %v291
    %v343 = vunpack.c.h.b16 %v291
    %v344 = vunpack.c.l.b16 %v292
    %v345 = vunpack.c.h.b16 %v292
    %v346 = vunpack.c.l.b16 %v293
    %v347 = vunpack.c.h.b16 %v293
    %v348 = vunpack.c.l.b16 %v294
    %v349 = vunpack.c.h.b16 %v294
    %v350 = vunpack.c.l.b16 %v295
    %v351 = vunpack.c.h.b16 %v295
    %v352 = vunpack.c.l.b16 %v296
    %v353 = vunpack.c.h.b16 %v296
    %v354 = vunpack.c.l.b16 %v297
    %v355 = vunpack.c.h.b16 %v297
    %v356 = vunpack.c.l.b16 %v298
    %v357 = vunpack.c.h.b16 %v298
    %v358 = vunpack.c.l.b16 %v299
    %v359 = vunpack.c.h.b16 %v299
    %v360 = vpack.c.b16 %v330, %v328
    %v361 = vpack.c.b16 %v331, %v329
    %v362 = vpack.c.b16 %v334, %v332
    %v363 = vpack.c.b16 %v335, %v333
    %v364 = vpack.c.b16 %v338, %v336
    %v365 = vpack.c.b16 %v339, %v337
    %v366 = vpack.c.b16 %v342, %v340
    %v367 = vpack.c.b16 %v343, %v341
    %v368 = vpack.c.b16 %v346, %v344
    %v369 = vpack.c.b16 %v347, %v345
    %v370 = vpack.c.b16 %v350, %v348
    %v371 = vpack.c.b16 %v351, %v349
    %v372 = vpack.c.b16 %v354, %v352
    %v373 = vpack.c.b16 %v355, %v353
    %v374 = vpack.c.b16 %v358, %v356
    %v375 = vpack.c.b16 %v359, %v357
    %392 = vmatprep.subr.bf16.mxu0 %v361
    %393 = vmatpush1.bf16.msra.mxu0 %v360
    %394 = vmatprep.subr.bf16.mxu0 %v363
    %395 = vmatpush1.bf16.msra.mxu0 %v362
    %396 = vmatprep.subr.bf16.mxu0 %v365
    %397 = vmatpush1.bf16.msra.mxu0 %v364
    %398 = vmatprep.subr.bf16.mxu0 %v367
    %399 = vmatpush1.bf16.msra.mxu0 %v366
    %400 = vmatprep.subr.bf16.mxu0 %v369
    %401 = vmatpush1.bf16.msra.mxu0 %v368
    %402 = vmatprep.subr.bf16.mxu0 %v371
    %403 = vmatpush1.bf16.msra.mxu0 %v370
    %404 = vmatprep.subr.bf16.mxu0 %v373
    %405 = vmatpush1.bf16.msra.mxu0 %v372
    %406 = vmatprep.subr.bf16.mxu0 %v375
    %407 = vmatpush1.bf16.msra.mxu0 %v374
    %408 = vmatprep.subr.bf16.mxu0 0
    %409 = vmatpush1.bf16.msra.mxu0 0
    %410 = vmatprep.subr.bf16.mxu0 0
    %411 = vmatpush1.bf16.msra.mxu0 0
    %412 = vmatprep.subr.bf16.mxu0 0
    %413 = vmatpush1.bf16.msra.mxu0 0
    %414 = vmatprep.subr.bf16.mxu0 0
    %415 = vmatpush1.bf16.msra.mxu0 0
    %416 = vmatprep.subr.bf16.mxu0 0
    %417 = vmatpush1.bf16.msra.mxu0 0
    %418 = vmatprep.subr.bf16.mxu0 0
    %419 = vmatpush1.bf16.msra.mxu0 0
    %420 = vmatprep.subr.bf16.mxu0 0
    %421 = vmatpush1.bf16.msra.mxu0 0
    %422 = vmatprep.subr.bf16.mxu0 0
    %423 = vmatpush1.bf16.msra.mxu0 0
    %424 = vmatprep.mubr.bf16.mxu0 0
    %425 = vmatmul.mubr.bf16.gmra.mrb[0].mxu0 %v276
    %v426 = vpop.f32.mrb[0].mxu0
    %v427 = vadd.f32 %v305, %v426
    %v428 = vpop.f32.mrb[0].mxu0
    %v429 = vadd.f32 %v309, %v428
    %v430 = vpop.f32.mrb[0].mxu0
    %v431 = vadd.f32 %v305, %v430
    %v432 = vpop.f32.mrb[0].mxu0
    %v433 = vadd.f32 %v309, %v432
    %434 = vmatprep.mubr.bf16.mxu0 0
    %435 = vmatmul.mubr.bf16.gmra.mrb[0].mxu0 %v277
    %v436 = vpop.f32.mrb[0].mxu0
    %v437 = vadd.f32 %v305, %v436
    %v438 = vpop.f32.mrb[0].mxu0
    %v439 = vadd.f32 %v309, %v438
    %v440 = vpop.f32.mrb[0].mxu0
    %v441 = vadd.f32 %v305, %v440
    %v442 = vpop.f32.mrb[0].mxu0
    %v443 = vadd.f32 %v309, %v442
    %444 = vmatprep.mubr.bf16.mxu0 0
    %445 = vmatmul.mubr.bf16.gmra.mrb[0].mxu0 %v278
    %v446 = vpop.f32.mrb[0].mxu0
    %v447 = vadd.f32 %v305, %v446
    %v448 = vpop.f32.mrb[0].mxu0
    %v449 = vadd.f32 %v309, %v448
    %v450 = vpop.f32.mrb[0].mxu0
    %v451 = vadd.f32 %v305, %v450
    %v452 = vpop.f32.mrb[0].mxu0
    %v453 = vadd.f32 %v309, %v452
    %454 = vmatprep.mubr.bf16.mxu0 0
    %455 = vmatmul.mubr.bf16.gmra.mrb[0].mxu0 %v279
    %v456 = vpop.f32.mrb[0].mxu0
    %v457 = vadd.f32 %v305, %v456
    %v458 = vpop.f32.mrb[0].mxu0
    %v459 = vadd.f32 %v309, %v458
    %v460 = vpop.f32.mrb[0].mxu0
    %v461 = vadd.f32 %v305, %v460
    %v462 = vpop.f32.mrb[0].mxu0
    %v463 = vadd.f32 %v309, %v462
    %464 = vmatprep.mubr.bf16.mxu0 0
    %465 = vmatmul.mubr.bf16.gmra.mrb[0].mxu0 %v280
    %v466 = vpop.f32.mrb[0].mxu0
    %v467 = vadd.f32 %v305, %v466
    %v468 = vpop.f32.mrb[0].mxu0
    %v469 = vadd.f32 %v309, %v468
    %v470 = vpop.f32.mrb[0].mxu0
    %v471 = vadd.f32 %v305, %v470
    %v472 = vpop.f32.mrb[0].mxu0
    %v473 = vadd.f32 %v309, %v472
    %474 = vmatprep.mubr.bf16.mxu0 0
    %475 = vmatmul.mubr.bf16.gmra.mrb[0].mxu0 %v281
    %v476 = vpop.f32.mrb[0].mxu0
    %v477 = vadd.f32 %v305, %v476
    %v478 = vpop.f32.mrb[0].mxu0
    %v479 = vadd.f32 %v309, %v478
    %v480 = vpop.f32.mrb[0].mxu0
    %v481 = vadd.f32 %v305, %v480
    %v482 = vpop.f32.mrb[0].mxu0
    %v483 = vadd.f32 %v309, %v482
    %484 = vmatprep.mubr.bf16.mxu0 0
    %485 = vmatmul.mubr.bf16.gmra.mrb[0].mxu0 %v282
    %v486 = vpop.f32.mrb[0].mxu0
    %v487 = vadd.f32 %v305, %v486
    %v488 = vpop.f32.mrb[0].mxu0
    %v489 = vadd.f32 %v309, %v488
    %v490 = vpop.f32.mrb[0].mxu0
    %v491 = vadd.f32 %v305, %v490
    %v492 = vpop.f32.mrb[0].mxu0
    %v493 = vadd.f32 %v309, %v492
    %494 = vmatprep.mubr.bf16.mxu0 0
    %495 = vmatmul.mubr.bf16.gmra.mrb[0].mxu0 %v283
    %v496 = vpop.f32.mrb[0].mxu0
    %v497 = vadd.f32 %v305, %v496
    %v498 = vpop.f32.mrb[0].mxu0
    %v499 = vadd.f32 %v309, %v498
    %v500 = vpop.f32.mrb[0].mxu0
    %v501 = vadd.f32 %v305, %v500
    %v502 = vpop.f32.mrb[0].mxu0
    %v503 = vadd.f32 %v309, %v502
    %504 = vdwg.mxu0
    %v505 = vtanh.pop %v427
    %v506 = vtanh.pop %v431
    %v507 = vtanh.pop %v437
    %v508 = vtanh.pop %v441
    %v509 = vtanh.pop %v447
    %v510 = vtanh.pop %v451
    %v511 = vtanh.pop %v457
    %v512 = vtanh.pop %v461
    %v513 = vtanh.pop %v467
    %v514 = vtanh.pop %v471
    %v515 = vtanh.pop %v477
    %v516 = vtanh.pop %v481
    %v517 = vtanh.pop %v487
    %v518 = vtanh.pop %v491
    %v519 = vtanh.pop %v497
    %v520 = vtanh.pop %v501
    %v521 = vxor.u32 %v429, 2147483648
    %v522 = vxor.u32 %v433, 2147483648
    %v523 = vxor.u32 %v439, 2147483648
    %v524 = vxor.u32 %v443, 2147483648
    %v525 = vxor.u32 %v449, 2147483648
    %v526 = vxor.u32 %v453, 2147483648
    %v527 = vxor.u32 %v459, 2147483648
    %v528 = vxor.u32 %v463, 2147483648
    %v529 = vxor.u32 %v469, 2147483648
    %v530 = vxor.u32 %v473, 2147483648
    %v531 = vxor.u32 %v479, 2147483648
    %v532 = vxor.u32 %v483, 2147483648
    %v533 = vxor.u32 %v489, 2147483648
    %v534 = vxor.u32 %v493, 2147483648
    %v535 = vxor.u32 %v499, 2147483648
    %v536 = vxor.u32 %v503, 2147483648
    %v537 = vmul.f32 %v521, 1.442695
    %v538 = vpow.pop %v537
    %v539 = vmul.f32 %v522, 1.442695
    %v540 = vpow.pop %v539
    %v541 = vmul.f32 %v523, 1.442695
    %v542 = vpow.pop %v541
    %v543 = vmul.f32 %v524, 1.442695
    %v544 = vpow.pop %v543
    %v545 = vmul.f32 %v525, 1.442695
    %v546 = vpow.pop %v545
    %v547 = vmul.f32 %v526, 1.442695
    %v548 = vpow.pop %v547
    %v549 = vmul.f32 %v527, 1.442695
    %v550 = vpow.pop %v549
    %v551 = vmul.f32 %v528, 1.442695
    %v552 = vpow.pop %v551
    %v553 = vmul.f32 %v529, 1.442695
    %v554 = vpow.pop %v553
    %v555 = vmul.f32 %v530, 1.442695
    %v556 = vpow.pop %v555
    %v557 = vmul.f32 %v531, 1.442695
    %v558 = vpow.pop %v557
    %v559 = vmul.f32 %v532, 1.442695
    %v560 = vpow.pop %v559
    %v561 = vmul.f32 %v533, 1.442695
    %v562 = vpow.pop %v561
    %v563 = vmul.f32 %v534, 1.442695
    %v564 = vpow.pop %v563
    %v565 = vmul.f32 %v535, 1.442695
    %v566 = vpow.pop %v565
    %v567 = vmul.f32 %v536, 1.442695
    %v568 = vpow.pop %v567
    %v569 = vadd.f32 %v538, 1.0
    %v570 = vadd.f32 %v540, 1.0
    %v571 = vadd.f32 %v542, 1.0
    %v572 = vadd.f32 %v544, 1.0
    %v573 = vadd.f32 %v546, 1.0
    %v574 = vadd.f32 %v548, 1.0
    %v575 = vadd.f32 %v550, 1.0
    %v576 = vadd.f32 %v552, 1.0
    %v577 = vadd.f32 %v554, 1.0
    %v578 = vadd.f32 %v556, 1.0
    %v579 = vadd.f32 %v558, 1.0
    %v580 = vadd.f32 %v560, 1.0
    %v581 = vadd.f32 %v562, 1.0
    %v582 = vadd.f32 %v564, 1.0
    %v583 = vadd.f32 %v566, 1.0
    %v584 = vadd.f32 %v568, 1.0
    %v585 = vrcp.pop %v569
    %v586 = vmul.f32 1.0, %v585
    %v587 = vrcp.pop %v570
    %v588 = vmul.f32 1.0, %v587
    %v589 = vrcp.pop %v571
    %v590 = vmul.f32 1.0, %v589
    %v591 = vrcp.pop %v572
    %v592 = vmul.f32 1.0, %v591
    %v593 = vrcp.pop %v573
    %v594 = vmul.f32 1.0, %v593
    %v595 = vrcp.pop %v574
    %v596 = vmul.f32 1.0, %v595
    %v597 = vrcp.pop %v575
    %v598 = vmul.f32 1.0, %v597
    %v599 = vrcp.pop %v576
    %v600 = vmul.f32 1.0, %v599
    %v601 = vrcp.pop %v577
    %v602 = vmul.f32 1.0, %v601
    %v603 = vrcp.pop %v578
    %v604 = vmul.f32 1.0, %v603
    %v605 = vrcp.pop %v579
    %v606 = vmul.f32 1.0, %v605
    %v607 = vrcp.pop %v580
    %v608 = vmul.f32 1.0, %v607
    %v609 = vrcp.pop %v581
    %v610 = vmul.f32 1.0, %v609
    %v611 = vrcp.pop %v582
    %v612 = vmul.f32 1.0, %v611
    %v613 = vrcp.pop %v583
    %v614 = vmul.f32 1.0, %v613
    %v615 = vrcp.pop %v584
    %v616 = vmul.f32 1.0, %v615
    %v617 = vmul.f32 %v505, %v586
    %v618 = vmul.f32 %v506, %v588
    %v619 = vmul.f32 %v507, %v590
    %v620 = vmul.f32 %v508, %v592
    %v621 = vmul.f32 %v509, %v594
    %v622 = vmul.f32 %v510, %v596
    %v623 = vmul.f32 %v511, %v598
    %v624 = vmul.f32 %v512, %v600
    %v625 = vmul.f32 %v513, %v602
    %v626 = vmul.f32 %v514, %v604
    %v627 = vmul.f32 %v515, %v606
    %v628 = vmul.f32 %v516, %v608
    %v629 = vmul.f32 %v517, %v610
    %v630 = vmul.f32 %v518, %v612
    %v631 = vmul.f32 %v519, %v614
    %v632 = vmul.f32 %v520, %v616
    %v633 = vpack.c.bf16 %v618, %v617
    %v634 = vpack.c.bf16 %v620, %v619
    %v635 = vpack.c.bf16 %v622, %v621
    %v636 = vpack.c.bf16 %v624, %v623
    %v637 = vpack.c.bf16 %v626, %v625
    %v638 = vpack.c.bf16 %v628, %v627
    %v639 = vpack.c.bf16 %v630, %v629
    %v640 = vpack.c.bf16 %v632, %v631
    %v641 = vld [vmem:[#allocation5] sm:$0xf]
    %v642 = vld [vmem:[#allocation5 + $0x4] sm:$0xf]
    %v643 = vld [vmem:[#allocation5 + $0x8] sm:$0xf]
    %v644 = vld [vmem:[#allocation5 + $0xc] sm:$0xf]
    %v645 = vld [vmem:[#allocation5 + $0x10] sm:$0xf]
    %v646 = vld [vmem:[#allocation5 + $0x14] sm:$0xf]
    %v647 = vld [vmem:[#allocation5 + $0x18] sm:$0xf]
    %v648 = vld [vmem:[#allocation5 + $0x1c] sm:$0xf]
    %v649 = vld [vmem:[#allocation5 + $0x20] sm:$0xf]
    %v650 = vld [vmem:[#allocation5 + $0x24] sm:$0xf]
    %v651 = vld [vmem:[#allocation5 + $0x28] sm:$0xf]
    %v652 = vld [vmem:[#allocation5 + $0x2c] sm:$0xf]
    %v653 = vld [vmem:[#allocation5 + $0x30] sm:$0xf]
    %v654 = vld [vmem:[#allocation5 + $0x34] sm:$0xf]
    %v655 = vld [vmem:[#allocation5 + $0x38] sm:$0xf]
    %v656 = vld [vmem:[#allocation5 + $0x3c] sm:$0xf]
    %v657 = vld [vmem:[%s6] sm:$0x1]
    %v659 = vlaneseq
    %v660 = vshrl.u32 %v659, 7
    %v661 = vsub.s32 0, %v660
    %v662 = vrot.slane %v657, %v661
    %v680 = vunpack.c.l.b16 %v641
    %v681 = vunpack.c.l.b16 %v642
    %v682 = vunpack.c.l.b16 %v643
    %v683 = vunpack.c.l.b16 %v644
    %v684 = vunpack.c.l.b16 %v645
    %v685 = vunpack.c.l.b16 %v646
    %v686 = vunpack.c.l.b16 %v647
    %v687 = vunpack.c.l.b16 %v648
    %v688 = vunpack.c.l.b16 %v649
    %v689 = vunpack.c.l.b16 %v650
    %v690 = vunpack.c.l.b16 %v651
    %v691 = vunpack.c.l.b16 %v652
    %v692 = vunpack.c.l.b16 %v653
    %v693 = vunpack.c.l.b16 %v654
    %v694 = vunpack.c.l.b16 %v655
    %v695 = vunpack.c.l.b16 %v656
    %v696 = vpack.c.b16 %v681, %v680
    %v697 = vpack.c.b16 %v683, %v682
    %v698 = vpack.c.b16 %v685, %v684
    %v699 = vpack.c.b16 %v687, %v686
    %v700 = vpack.c.b16 %v689, %v688
    %v701 = vpack.c.b16 %v691, %v690
    %v702 = vpack.c.b16 %v693, %v692
    %v703 = vpack.c.b16 %v695, %v694
    %712 = vmatprep.subr.bf16.mxu0 0
    %713 = vmatpush1.bf16.msra.mxu0 %v696
    %714 = vmatprep.subr.bf16.mxu0 0
    %715 = vmatpush1.bf16.msra.mxu0 %v697
    %716 = vmatprep.subr.bf16.mxu0 0
    %717 = vmatpush1.bf16.msra.mxu0 %v698
    %718 = vmatprep.subr.bf16.mxu0 0
    %719 = vmatpush1.bf16.msra.mxu0 %v699
    %720 = vmatprep.subr.bf16.mxu0 0
    %721 = vmatpush1.bf16.msra.mxu0 %v700
    %722 = vmatprep.subr.bf16.mxu0 0
    %723 = vmatpush1.bf16.msra.mxu0 %v701
    %724 = vmatprep.subr.bf16.mxu0 0
    %725 = vmatpush1.bf16.msra.mxu0 %v702
    %726 = vmatprep.subr.bf16.mxu0 0
    %727 = vmatpush1.bf16.msra.mxu0 %v703
    %728 = vmatprep.subr.bf16.mxu0 0
    %729 = vmatpush1.bf16.msra.mxu0 0
    %730 = vmatprep.subr.bf16.mxu0 0
    %731 = vmatpush1.bf16.msra.mxu0 0
    %732 = vmatprep.subr.bf16.mxu0 0
    %733 = vmatpush1.bf16.msra.mxu0 0
    %734 = vmatprep.subr.bf16.mxu0 0
    %735 = vmatpush1.bf16.msra.mxu0 0
    %736 = vmatprep.subr.bf16.mxu0 0
    %737 = vmatpush1.bf16.msra.mxu0 0
    %738 = vmatprep.subr.bf16.mxu0 0
    %739 = vmatpush1.bf16.msra.mxu0 0
    %740 = vmatprep.subr.bf16.mxu0 0
    %741 = vmatpush1.bf16.msra.mxu0 0
    %742 = vmatprep.subr.bf16.mxu0 0
    %743 = vmatpush1.bf16.msra.mxu0 0
    %744 = vmatprep.mubr.bf16.mxu0 0
    %745 = vmatmul.mubr.bf16.gmra.mrb[0].mxu0 %v633
    %v746 = vpop.f32.mrb[0].mxu0
    %v747 = vadd.f32 %v662, %v746
    %v748 = vpop.f32.mrb[0].mxu0
    %v749 = vpop.f32.mrb[0].mxu0
    %v750 = vadd.f32 %v662, %v749
    %v751 = vpop.f32.mrb[0].mxu0
    %752 = vmatprep.mubr.bf16.mxu0 0
    %753 = vmatmul.mubr.bf16.gmra.mrb[0].mxu0 %v634
    %v754 = vpop.f32.mrb[0].mxu0
    %v755 = vadd.f32 %v662, %v754
    %v756 = vpop.f32.mrb[0].mxu0
    %v757 = vpop.f32.mrb[0].mxu0
    %v758 = vadd.f32 %v662, %v757
    %v759 = vpop.f32.mrb[0].mxu0
    %760 = vmatprep.mubr.bf16.mxu0 0
    %761 = vmatmul.mubr.bf16.gmra.mrb[0].mxu0 %v635
    %v762 = vpop.f32.mrb[0].mxu0
    %v763 = vadd.f32 %v662, %v762
    %v764 = vpop.f32.mrb[0].mxu0
    %v765 = vpop.f32.mrb[0].mxu0
    %v766 = vadd.f32 %v662, %v765
    %v767 = vpop.f32.mrb[0].mxu0
    %768 = vmatprep.mubr.bf16.mxu0 0
    %769 = vmatmul.mubr.bf16.gmra.mrb[0].mxu0 %v636
    %v770 = vpop.f32.mrb[0].mxu0
    %v771 = vadd.f32 %v662, %v770
    %v772 = vpop.f32.mrb[0].mxu0
    %v773 = vpop.f32.mrb[0].mxu0
    %v774 = vadd.f32 %v662, %v773
    %v775 = vpop.f32.mrb[0].mxu0
    %776 = vmatprep.mubr.bf16.mxu0 0
    %777 = vmatmul.mubr.bf16.gmra.mrb[0].mxu0 %v637
    %v778 = vpop.f32.mrb[0].mxu0
    %v779 = vadd.f32 %v662, %v778
    %v780 = vpop.f32.mrb[0].mxu0
    %v781 = vpop.f32.mrb[0].mxu0
    %v782 = vadd.f32 %v662, %v781
    %v783 = vpop.f32.mrb[0].mxu0
    %784 = vmatprep.mubr.bf16.mxu0 0
    %785 = vmatmul.mubr.bf16.gmra.mrb[0].mxu0 %v638
    %v786 = vpop.f32.mrb[0].mxu0
    %v787 = vadd.f32 %v662, %v786
    %v788 = vpop.f32.mrb[0].mxu0
    %v789 = vpop.f32.mrb[0].mxu0
    %v790 = vadd.f32 %v662, %v789
    %v791 = vpop.f32.mrb[0].mxu0
    %792 = vmatprep.mubr.bf16.mxu0 0
    %793 = vmatmul.mubr.bf16.gmra.mrb[0].mxu0 %v639
    %v794 = vpop.f32.mrb[0].mxu0
    %v795 = vadd.f32 %v662, %v794
    %v796 = vpop.f32.mrb[0].mxu0
    %v797 = vpop.f32.mrb[0].mxu0
    %v798 = vadd.f32 %v662, %v797
    %v799 = vpop.f32.mrb[0].mxu0
    %800 = vmatprep.mubr.bf16.mxu0 0
    %801 = vmatmul.mubr.bf16.gmra.mrb[0].mxu0 %v640
    %v802 = vpop.f32.mrb[0].mxu0
    %v803 = vadd.f32 %v662, %v802
    %v804 = vpop.f32.mrb[0].mxu0
    %v805 = vpop.f32.mrb[0].mxu0
    %v806 = vadd.f32 %v662, %v805
    %v807 = vpop.f32.mrb[0].mxu0
    %808 = vdwg.mxu0
    %809 = vxpose.xlu0.b32.start [1/16] %v747, 128
    %810 = vxpose.xlu0.b32.cont [2/16] %v750, 128
    %811 = vxpose.xlu0.b32.cont [3/16] %v755, 128
    %812 = vxpose.xlu0.b32.cont [4/16] %v758, 128
    %813 = vxpose.xlu0.b32.cont [5/16] %v763, 128
    %814 = vxpose.xlu0.b32.cont [6/16] %v766, 128
    %815 = vxpose.xlu0.b32.cont [7/16] %v771, 128
    %816 = vxpose.xlu0.b32.cont [8/16] %v774, 128
    %817 = vxpose.xlu0.b32.cont [9/16] %v779, 128
    %818 = vxpose.xlu0.b32.cont [10/16] %v782, 128
    %819 = vxpose.xlu0.b32.cont [11/16] %v787, 128
    %820 = vxpose.xlu0.b32.cont [12/16] %v790, 128
    %821 = vxpose.xlu0.b32.cont [13/16] %v795, 128
    %822 = vxpose.xlu0.b32.cont [14/16] %v798, 128
    %823 = vxpose.xlu0.b32.cont [15/16] %v803, 128
    %824 = vxpose.xlu0.b32.end [16/16] %v806, 128
    %v825 = vpop.trf.xlu0
    %v826 = vpop.trf.xlu0
    %v827 = vpop.trf.xlu0
    %v828 = vpop.trf.xlu0
    %v829 = vpop.trf.xlu0
    %v830 = vpop.trf.xlu0
    %v831 = vpop.trf.xlu0
    %v832 = vpop.trf.xlu0
    %v833 = vpop.trf.xlu0
    %v834 = vpop.trf.xlu0
    %v835 = vpop.trf.xlu0
    %v836 = vpop.trf.xlu0
    %v837 = vpop.trf.xlu0
    %v838 = vpop.trf.xlu0
    %v839 = vpop.trf.xlu0
    %v840 = vpop.trf.xlu0
    %841 = vst [vmem:[#allocation8] sm:$0xff] %v825
    %v842 = vlaneseq
    %v843 = vand.u32 %v842, 127
    %s844 = smul.u32 0, 128
    %v845 = vstv %s844
    %v846 = vadd.s32 %v843, %v845
    %vm847 = vcmp.lt.s32.totalorder %v846, 8
    %v848 = vsel %vm847, %v825, -1e+30
    %849 = vmax.xlane.f32.xlu0 %v848
    %v850 = vpop.xlane.xlu0 %849
    %v851 = vld [vmem:[#allocation2] sm:$0xff]
    %v852 = vmax.f32 %v851, %v850
    %v853 = vsub.f32 %v851, %v852
    %v854 = vmul.f32 %v853, 1.442695
    %v855 = vpow.pop %v854
    %857 = vset.pattern.permute.xlu0 0
    %858 = vperm.xlu0 %857, %v852
    %v859 = vpop.permute.xlu0 %858
    %v861 = vsub.f32 %v848, %v859
    %v862 = vmul.f32 %v861, 1.442695
    %v863 = vpow.pop %v862
    %v864 = vld [vmem:[#allocation3] sm:$0xff]
    %v865 = vmul.f32 %v855, %v864
    %866 = vadd.xlane.f32.xlu0 %v863
    %v867 = vpop.xlane.xlu0 %866
    %v868 = vadd.f32 %v865, %v867
    %vm869 = vcmask 7168
    %870 = vst.msk [vmem:[#allocation3] sm:$0xff] %vm869, %v868
    %v871 = vld [vmem:[#allocation4] sm:$0xff]
    %873 = vset.pattern.permute.xlu0 0
    %874 = vperm.xlu0 %873, %v855
    %v875 = vpop.permute.xlu0 %874
    %v877 = vmul.f32 %v875, %v871
    %v878 = vpack.c.bf16 %v863, %v863
    %879 = vmatprep.subr.bf16.mxu0 0
    %880 = vmatpush1.bf16.msra.mxu0 %v276
    %881 = vmatprep.subr.bf16.mxu0 0
    %882 = vmatpush1.bf16.msra.mxu0 %v277
    %883 = vmatprep.subr.bf16.mxu0 0
    %884 = vmatpush1.bf16.msra.mxu0 %v278
    %885 = vmatprep.subr.bf16.mxu0 0
    %886 = vmatpush1.bf16.msra.mxu0 %v279
    %887 = vmatprep.subr.bf16.mxu0 0
    %888 = vmatpush1.bf16.msra.mxu0 %v280
    %889 = vmatprep.subr.bf16.mxu0 0
    %890 = vmatpush1.bf16.msra.mxu0 %v281
    %891 = vmatprep.subr.bf16.mxu0 0
    %892 = vmatpush1.bf16.msra.mxu0 %v282
    %893 = vmatprep.subr.bf16.mxu0 0
    %894 = vmatpush1.bf16.msra.mxu0 %v283
    %895 = vmatprep.subr.bf16.mxu0 0
    %896 = vmatpush1.bf16.msra.mxu0 0
    %897 = vmatprep.subr.bf16.mxu0 0
    %898 = vmatpush1.bf16.msra.mxu0 0
    %899 = vmatprep.subr.bf16.mxu0 0
    %900 = vmatpush1.bf16.msra.mxu0 0
    %901 = vmatprep.subr.bf16.mxu0 0
    %902 = vmatpush1.bf16.msra.mxu0 0
    %903 = vmatprep.subr.bf16.mxu0 0
    %904 = vmatpush1.bf16.msra.mxu0 0
    %905 = vmatprep.subr.bf16.mxu0 0
    %906 = vmatpush1.bf16.msra.mxu0 0
    %907 = vmatprep.subr.bf16.mxu0 0
    %908 = vmatpush1.bf16.msra.mxu0 0
    %909 = vmatprep.subr.bf16.mxu0 0
    %910 = vmatpush1.bf16.msra.mxu0 0
    %911 = vmatprep.mubr.bf16.mxu0 0
    %912 = vmatmul.mubr.bf16.gmra.mrb[0].mxu0 %v878
    %v913 = vpop.f32.mrb[0].mxu0
    %v914 = vadd.f32 0.0, %v913
    %v915 = vpop.f32.mrb[0].mxu0
    %v916 = vpop.f32.mrb[0].mxu0
    %v917 = vpop.f32.mrb[0].mxu0
    %918 = vdwg.mxu0
    %v919 = vadd.f32 %v877, %v914
    %920 = vst [vmem:[#allocation4] sm:$0xff] %v919
    %921 = vst.msk [vmem:[#allocation2] sm:$0xff] %vm869, %v852
    // Predicated region
    $region46: #{tpu_custom_call.1} parent=1 // pred_check
      %p922 = pneg %p51
    $region47: #{tpu_custom_call.1} parent=1 // pred_check_branch
      %924 = sbr.rel (%p922) target = $region49
    $region48: #{tpu_custom_call.1} parent=1 // pred_region
      %v925 = vld [vmem:[#allocation3] sm:$0xff]
      %v926 = vrcp.pop %v925
      %v927 = vld [vmem:[#allocation4] sm:$0xff]
      %929 = vset.pattern.permute.xlu0 0
      %930 = vperm.xlu0 %929, %v926
      %v931 = vpop.permute.xlu0 %930
      %v933 = vmul.f32 %v927, %v931
      %v934 = vpack.c.bf16 %v933, %v933
      %v935 = vld [vmem:[%s7] sm:$0xf]
      %v936 = vld [vmem:[%s7 + $0x4] sm:$0xf]
      %v937 = vld [vmem:[%s7 + $0x8] sm:$0xf]
      %v938 = vld [vmem:[%s7 + $0xc] sm:$0xf]
      %v939 = vld [vmem:[%s7 + $0x10] sm:$0xf]
      %v940 = vld [vmem:[%s7 + $0x14] sm:$0xf]
      %v941 = vld [vmem:[%s7 + $0x18] sm:$0xf]
      %v942 = vld [vmem:[%s7 + $0x1c] sm:$0xf]
      %v943 = vld [vmem:[%s7 + $0x20] sm:$0xf]
      %v944 = vld [vmem:[%s7 + $0x24] sm:$0xf]
      %v945 = vld [vmem:[%s7 + $0x28] sm:$0xf]
      %v946 = vld [vmem:[%s7 + $0x2c] sm:$0xf]
      %v947 = vld [vmem:[%s7 + $0x30] sm:$0xf]
      %v948 = vld [vmem:[%s7 + $0x34] sm:$0xf]
      %v949 = vld [vmem:[%s7 + $0x38] sm:$0xf]
      %v950 = vld [vmem:[%s7 + $0x3c] sm:$0xf]
      %v951 = vld [vmem:[%s8] sm:$0x1]
      %v953 = vlaneseq
      %v954 = vshrl.u32 %v953, 7
      %v955 = vsub.s32 0, %v954
      %v956 = vrot.slane %v951, %v955
      %v974 = vunpack.c.l.b16 %v935
      %v975 = vunpack.c.l.b16 %v936
      %v976 = vunpack.c.l.b16 %v937
      %v977 = vunpack.c.l.b16 %v938
      %v978 = vunpack.c.l.b16 %v939
      %v979 = vunpack.c.l.b16 %v940
      %v980 = vunpack.c.l.b16 %v941
      %v981 = vunpack.c.l.b16 %v942
      %v982 = vunpack.c.l.b16 %v943
      %v983 = vunpack.c.l.b16 %v944
      %v984 = vunpack.c.l.b16 %v945
      %v985 = vunpack.c.l.b16 %v946
      %v986 = vunpack.c.l.b16 %v947
      %v987 = vunpack.c.l.b16 %v948
      %v988 = vunpack.c.l.b16 %v949
      %v989 = vunpack.c.l.b16 %v950
      %v990 = vpack.c.b16 %v975, %v974
      %v991 = vpack.c.b16 %v977, %v976
      %v992 = vpack.c.b16 %v979, %v978
      %v993 = vpack.c.b16 %v981, %v980
      %v994 = vpack.c.b16 %v983, %v982
      %v995 = vpack.c.b16 %v985, %v984
      %v996 = vpack.c.b16 %v987, %v986
      %v997 = vpack.c.b16 %v989, %v988
      %1006 = vmatprep.subr.bf16.mxu0 0
      %1007 = vmatpush1.bf16.msra.mxu0 %v990
      %1008 = vmatprep.subr.bf16.mxu0 0
      %1009 = vmatpush1.bf16.msra.mxu0 %v991
      %1010 = vmatprep.subr.bf16.mxu0 0
      %1011 = vmatpush1.bf16.msra.mxu0 %v992
      %1012 = vmatprep.subr.bf16.mxu0 0
      %1013 = vmatpush1.bf16.msra.mxu0 %v993
      %1014 = vmatprep.subr.bf16.mxu0 0
      %1015 = vmatpush1.bf16.msra.mxu0 %v994
      %1016 = vmatprep.subr.bf16.mxu0 0
      %1017 = vmatpush1.bf16.msra.mxu0 %v995
      %1018 = vmatprep.subr.bf16.mxu0 0
      %1019 = vmatpush1.bf16.msra.mxu0 %v996
      %1020 = vmatprep.subr.bf16.mxu0 0
      %1021 = vmatpush1.bf16.msra.mxu0 %v997
      %1022 = vmatprep.subr.bf16.mxu0 0
      %1023 = vmatpush1.bf16.msra.mxu0 0
      %1024 = vmatprep.subr.bf16.mxu0 0
      %1025 = vmatpush1.bf16.msra.mxu0 0
      %1026 = vmatprep.subr.bf16.mxu0 0
      %1027 = vmatpush1.bf16.msra.mxu0 0
      %1028 = vmatprep.subr.bf16.mxu0 0
      %1029 = vmatpush1.bf16.msra.mxu0 0
      %1030 = vmatprep.subr.bf16.mxu0 0
      %1031 = vmatpush1.bf16.msra.mxu0 0
      %1032 = vmatprep.subr.bf16.mxu0 0
      %1033 = vmatpush1.bf16.msra.mxu0 0
      %1034 = vmatprep.subr.bf16.mxu0 0
      %1035 = vmatpush1.bf16.msra.mxu0 0
      %1036 = vmatprep.subr.bf16.mxu0 0
      %1037 = vmatpush1.bf16.msra.mxu0 0
      %1038 = vmatprep.mubr.bf16.mxu0 0
      %1039 = vmatmul.mubr.bf16.gmra.mrb[0].mxu0 %v934
      %v1040 = vpop.f32.mrb[0].mxu0
      %v1041 = vadd.f32 %v956, %v1040
      %v1042 = vpop.f32.mrb[0].mxu0
      %v1043 = vpop.f32.mrb[0].mxu0
      %v1044 = vpop.f32.mrb[0].mxu0
      %1045 = vdwg.mxu0
      %vm1046 = vcmask 24576
      %1047 = vst.msk [vmem:[#allocation9] sm:$0x1] %vm1046, %v1041
    $region49: #{tpu_custom_call.1} parent=1 // pred_fallthru
      _
    // Predicated region
    $region50: #{tpu_custom_call.1} parent=1 // pred_check
      _
    $region51: #{tpu_custom_call.1} parent=1 // pred_check_branch
      %1049 = sbr.rel (0) target = $region53
    $region52: #{tpu_custom_call.1} parent=1 // pred_region
      %s1051 = ssub.s32 128, 128
      %1052 = vsyncadd [#allocation7], %s1051
      %s1054 = sshll.u32 [#allocation8], 4
      %s1055 = int_to_ptr.vmem [resolvable:$true] %s1054
      %1057 = dma.vmem_to_hbm [thread:$0]  %s1055, 128, %s9, [#allocation7]
    $region53: #{tpu_custom_call.1} parent=1 // pred_fallthru
      _
    // Predicated region
    $region54: #{tpu_custom_call.1} parent=1 // pred_check
      _
    $region55: #{tpu_custom_call.1} parent=1 // pred_check_branch
      %1059 = sbr.rel (0) target = $region57
    $region56: #{tpu_custom_call.1} parent=1 // pred_region
      %s1061 = ssub.s32 16, 16
      %1062 = vsyncadd [#allocation10], %s1061
      %s1064 = sshll.u32 [#allocation9], 4
      %s1065 = int_to_ptr.vmem [resolvable:$true] %s1064
      %1067 = dma.vmem_to_hbm [thread:$0]  %s1065, 16, %s10, [#allocation10]
    $region57: #{tpu_custom_call.1} parent=1 // pred_fallthru
      _
    // Predicated region
    $region58: #{tpu_custom_call.1} parent=1 // pred_check
      _
    $region59: #{tpu_custom_call.1} parent=1 // pred_check_branch
      %1069 = sbr.rel (0) target = $region61
    $region60: #{tpu_custom_call.1} parent=1 // pred_region
      %1070 = dma.done [#allocation7], 128
    $region61: #{tpu_custom_call.1} parent=1 // pred_fallthru
      _
    // Predicated region
    $region62: #{tpu_custom_call.1} parent=1 // pred_check
      _
    $region63: #{tpu_custom_call.1} parent=1 // pred_check_branch
      %1072 = sbr.rel (0) target = $region65
    $region64: #{tpu_custom_call.1} parent=1 // pred_region
      %1073 = dma.done [#allocation10], 16
    $region65: #{tpu_custom_call.1} parent=1 // pred_fallthru
      _
    %1074 = vsyncpa [#allocation6], 1
    %1075 = vsyncpa [#allocation7], 1
    %1076 = vsyncpa [#allocation10], 1

</llo_original>
